<compile_context>
chip_gen: v6e
topology: v6e:2x2x1
jax: 0.10.0
libtpu: 0.0.40
codegen_flags: <defaults>
</compile_context>

<pallas_src>
import jax
import jax.numpy as jnp
from jax import lax
from jax.experimental import pallas as pl
from jax.experimental.pallas import tpu as pltpu


# --------------------------------------------------------------------------
# Kernel
# --------------------------------------------------------------------------
def _make_classblock_kernel(b_real, recompute_stats_per_step):
    """Builds the fused BN(train-mode) + Linear(bias=False) kernel body.

    b_real: number of valid (non-padded) batch rows; BN stats use only these.
    recompute_stats_per_step: if True, recompute the folded BN scale/shift and
      the bf16 activation cache on every class tile (lets the class-tile grid
      axis be "parallel" for v7x's 2 TensorCores). If False, compute them once
      under pl.when(j == 0) and reuse the cached results ("arbitrary" axis,
      v5e/v6e single-TC path).
    """

    def kernel(x_ref, gamma_ref, beta_ref, w_ref, logits_ref, f_ref, xn_ref):
        def stats_and_cache():
            x = x_ref[...]                                    # (Bp, D) f32
            bp = x.shape[0]
            inv_b = 1.0 / float(b_real)
            if bp != b_real:                                  # padded batch rows
                row = lax.broadcasted_iota(jnp.int32, x.shape, 0)
                valid = row < b_real
                xs = jnp.where(valid, x, 0.0)
            else:
                valid = None
                xs = x
            mean = jnp.sum(xs, axis=0, keepdims=True) * inv_b     # (1, D)
            centered = x - mean
            c2 = centered * centered                               # two-pass var
            if valid is not None:
                c2 = jnp.where(valid, c2, 0.0)
            var = jnp.sum(c2, axis=0, keepdims=True) * inv_b       # biased var
            scale = lax.rsqrt(var + 1e-5) * gamma_ref[...]         # folded affine
            f = centered * scale + beta_ref[...]                   # f = bn(x)
            f_ref[...] = f                                         # resident output
            xn_ref[...] = f.astype(jnp.bfloat16)                   # MXU LHS cache

        if recompute_stats_per_step:
            stats_and_cache()                  # idempotent; class axis "parallel"
        else:
            pl.when(pl.program_id(0) == 0)(stats_and_cache)

        # logits[:, j*TN:(j+1)*TN] = f @ W^T tile  (bf16 MXU, f32 accumulate).
        logits_ref[...] = jnp.dot(
            xn_ref[...], w_ref[...], preferred_element_type=jnp.float32
        )

    return kernel


# --------------------------------------------------------------------------
# One-time weight preparation (hoist out of the per-call path)
# --------------------------------------------------------------------------
def choose_class_tile(d, c, w_budget_bytes=8 * 1024 * 1024):
    """Pick the class-tile width TN (multiple of 128).

    Use a single tile covering the whole 128-padded class dim when the
    double-buffered bf16 W slab fits the budget; otherwise the widest of
    512/256/128 that does. Budget is conservative so it also fits v7x's
    64 MiB VMEM with room for the resident x/f/scratch blocks.
    """
    cpad128 = pl.cdiv(c, 128) * 128
    if 2 * d * cpad128 * 2 <= w_budget_bytes:
        return cpad128
    for tn in (512, 256, 128):
        if 2 * d * tn * 2 <= w_budget_bytes:
            return tn
    return 128


def prepare_classifier(w, w_budget_bytes=8 * 1024 * 1024):
    """One-time classifier-weight prep: call at weight-load time, NOT per
    forward call. (C, D) f32 PyTorch Linear weight -> lane-dense (D, Cpad)
    bf16, zero-padded to a multiple of the chosen tile width."""
    c, d = w.shape
    tile_n = choose_class_tile(d, c, w_budget_bytes)
    cpad = pl.cdiv(c, tile_n) * tile_n
    w_t = jnp.pad(w.T.astype(jnp.bfloat16), ((0, 0), (0, cpad - c)))
    return w_t, tile_n


# --------------------------------------------------------------------------
# Forward
# --------------------------------------------------------------------------
def class_block_forward(x, gamma, beta, w_t, tile_n, class_num, *,
                        recompute_stats_per_step=None,
                        return_padded_logits=False,
                        vmem_limit_bytes=32 * 1024 * 1024):
    """ClassBlock forward (bnorm=True, linear=False, relu=False, droprate=0,
    return_f=True, circle=False).

    x: (B, D, 1, 1) or (B, D) f32; gamma/beta: (D,) BN affine; w_t/tile_n from
    prepare_classifier(). Returns (logits (B, class_num) f32, f (B, D) f32).
    With return_padded_logits=True the logits keep the zero-padded Cpad columns
    (skips the post-kernel slice for memory-bound callers)."""
    # glue: PyTorch's x.squeeze().squeeze() / unsqueeze on degenerate dims
    if x.ndim == 4:
        x = jnp.squeeze(x, axis=(2, 3))
    if x.ndim == 1:
        x = x[None, :]
    x = x.astype(jnp.float32)
    b, d = x.shape
    cpad = w_t.shape[1]
    assert cpad % tile_n == 0, "w_t must be padded to a multiple of tile_n"
    nc = cpad // tile_n

    if recompute_stats_per_step is None:
        # v7x has 2 TensorCores/chip: recompute the cheap BN fold per class
        # tile so the tile axis can be sharded "parallel" across them.
        try:
            recompute_stats_per_step = "v7" in jax.devices()[0].device_kind.lower()
        except Exception:  # pragma: no cover - conservative fallback
            recompute_stats_per_step = False

    # Pad batch rows to a sublane multiple; BN stats are masked to the real B.
    bp = pl.cdiv(b, 8) * 8
    if bp != b:
        x = jnp.pad(x, ((0, bp - b), (0, 0)))

    gamma2 = gamma.reshape(1, d).astype(jnp.float32)
    beta2 = beta.reshape(1, d).astype(jnp.float32)

    kernel = _make_classblock_kernel(b, recompute_stats_per_step)

    cost = pl.CostEstimate(
        flops=2 * bp * d * cpad,
        transcendentals=0,
        bytes_accessed=d * cpad * 2          # bf16 W stream (dominant)
        + bp * d * 4 * 2                     # x read + f write
        + bp * cpad * 4,                     # logits write
    )

    logits_pad, f = pl.pallas_call(
        kernel,
        out_shape=(
            jax.ShapeDtypeStruct((bp, cpad), jnp.float32),   # logits (padded C)
            jax.ShapeDtypeStruct((bp, d), jnp.float32),      # f
        ),
        grid_spec=pltpu.PrefetchScalarGridSpec(
            num_scalar_prefetch=0,
            grid=(nc,),                                      # class tiles
            in_specs=[
                pl.BlockSpec((bp, d), lambda j: (0, 0)),     # x   (resident)
                pl.BlockSpec((1, d), lambda j: (0, 0)),      # gamma
                pl.BlockSpec((1, d), lambda j: (0, 0)),      # beta
                # TODO(synk): sweep pipeline_mode=pl.Buffered(3) on this spec
                # (3-deep weight buffering) once profiled on the target chip.
                pl.BlockSpec((d, tile_n), lambda j: (0, j)),  # W^T tile (bf16)
            ],
            out_specs=[
                pl.BlockSpec((bp, tile_n), lambda j: (0, j)),  # logits tile
                pl.BlockSpec((bp, d), lambda j: (0, 0)),       # f (resident)
            ],
            scratch_shapes=[pltpu.VMEM((bp, d), jnp.bfloat16)],  # bf16 f cache
        ),
        compiler_params=pltpu.CompilerParams(
            dimension_semantics=(
                ("parallel",) if recompute_stats_per_step else ("arbitrary",)
            ),
            vmem_limit_bytes=vmem_limit_bytes,
        ),
        cost_estimate=cost,
    )(x, gamma2, beta2, w_t)

    logits = logits_pad if return_padded_logits else logits_pad[:, :class_num]
    if bp != b:
        logits = logits[:b]
        f = f[:b]
    return logits, f


# --------------------------------------------------------------------------
# Self-test
# --------------------------------------------------------------------------
if __name__ == "__main__":
    # Small shapes consistent with the module: (B, input_dim, 1, 1).
    # C=200 exercises class-dim padding (-> 256-wide single tile).
    B, D, C = 8, 32, 200

    key = jax.random.PRNGKey(0)
    kx, kw = jax.random.split(key)

    # input feature map, NCHW with 1x1 spatial (typical use of ClassBlock)
    x = jax.random.normal(kx, (B, D, 1, 1), dtype=jnp.float32)

    # Deterministic parameter init matching the module's __init__:
    #  - BatchNorm1d: weight=1.0, bias=0.0 (weights_init_kaiming)
    gamma = jnp.ones((D,), dtype=jnp.float32)
    beta = jnp.zeros((D,), dtype=jnp.float32)
    #  - classifier Linear(D, C, bias=False): weight ~ N(0, std=0.001), (C, D)
    w = 0.001 * jax.random.normal(kw, (C, D), dtype=jnp.float32)

    # One-time weight prep, hoisted out of the per-call path.
    w_t, tile_n = prepare_classifier(w)
    w_t = jax.block_until_ready(w_t)

    def reference(x_nchw, b_real):
        xr = jnp.squeeze(x_nchw, axis=(2, 3))[:b_real]
        mean = jnp.mean(xr, axis=0, keepdims=True)
        var = jnp.mean((xr - mean) ** 2, axis=0, keepdims=True)
        f_r = (xr - mean) / jnp.sqrt(var + 1e-5) * gamma + beta
        return f_r @ w.T, f_r

    # 1) auto variant (compute-once stats on v5e/v6e; per-step recompute +
    #    "parallel" class axis on v7x)
    logits, f = class_block_forward(x, gamma, beta, w_t, tile_n, C)
    jax.block_until_ready((logits, f))
    logits_r, f_r = reference(x, B)
    assert logits.shape == (B, C) and f.shape == (B, D)
    assert jnp.allclose(f, f_r, atol=1e-4), "f mismatch"
    # logits computed with bf16 MXU inputs (f32 accumulate) -> looser tolerance
    assert jnp.allclose(logits, logits_r, atol=1e-3), "logits mismatch"

    # 2) non-multiple-of-8 batch + forced per-step-recompute path
    B2 = 6
    x2 = x[:B2]
    logits2, f2 = class_block_forward(
        x2, gamma, beta, w_t, tile_n, C, recompute_stats_per_step=True
    )
    jax.block_until_ready((logits2, f2))
    logits2_r, f2_r = reference(x2, B2)
    assert logits2.shape == (B2, C) and f2.shape == (B2, D)
    assert jnp.allclose(f2, f2_r, atol=1e-4), "f mismatch (padded batch)"
    assert jnp.allclose(logits2, logits2_r, atol=1e-3), "logits mismatch (padded batch)"

    # TODO(synk): eval-mode BatchNorm (running_mean/running_var) and the
    # circle=True normalized-classifier path are not implemented (not part of
    # the default-config forward).

    print("KERNEL_OK")
</pallas_src>

<mosaic_0001>
module attributes {stable_mosaic.version = 11 : i64} {
  func.func @kernel(%arg0: i32, %arg1: memref<8x32xf32, #tpu.memory_space<vmem>>, %arg2: memref<1x32xf32, #tpu.memory_space<vmem>>, %arg3: memref<1x32xf32, #tpu.memory_space<vmem>>, %arg4: memref<32x256xbf16, #tpu.memory_space<vmem>>, %arg5: memref<8x256xf32, #tpu.memory_space<vmem>>, %arg6: memref<8x32xf32, #tpu.memory_space<vmem>>, %arg7: memref<8x32xbf16, #tpu.memory_space<vmem>>) attributes {dimension_semantics = [#tpu.dimension_semantics<arbitrary>], iteration_bounds = array<i64: 1>, scalar_prefetch = 0 : i64, scratch_operands = 1 : i64, tpu.core_type = #tpu.core_type<tc>, window_params = [{pipeline_mode = #tpu.pipeline_mode<synchronous>, transform_indices = @transform_0, window_bounds = array<i64: 8, 32>}, {pipeline_mode = #tpu.pipeline_mode<synchronous>, transform_indices = @transform_1, window_bounds = array<i64: 1, 32>}, {pipeline_mode = #tpu.pipeline_mode<synchronous>, transform_indices = @transform_2, window_bounds = array<i64: 1, 32>}, {transform_indices = @transform_3, window_bounds = array<i64: 32, 256>}, {transform_indices = @transform_4, window_bounds = array<i64: 8, 256>}, {pipeline_mode = #tpu.pipeline_mode<synchronous>, transform_indices = @transform_5, window_bounds = array<i64: 8, 32>}]} {
    %c0_i32 = arith.constant 0 : i32
    %0 = arith.cmpi eq, %arg0, %c0_i32 : i32
    %1 = arith.extui %0 : i1 to i32
    %c0_i32_0 = arith.constant 0 : i32
    %2 = arith.cmpi ne, %1, %c0_i32_0 : i32
    scf.if %2 {
      %c0_6 = arith.constant 0 : index
      %c0_7 = arith.constant 0 : index
      %7 = vector.load %arg1[%c0_6, %c0_7] : memref<8x32xf32, #tpu.memory_space<vmem>>, vector<8x32xf32>
      %cst_8 = arith.constant dense<0.000000e+00> : vector<32xf32>
      %8 = vector.multi_reduction <add>, %7, %cst_8 [0] : vector<8x32xf32> to vector<32xf32>
      %9 = vector.shape_cast %8 : vector<32xf32> to vector<1x32xf32>
      %cst_9 = arith.constant 1.250000e-01 : f32
      %10 = vector.broadcast %cst_9 : f32 to vector<1x32xf32>
      %11 = arith.mulf %9, %10 : vector<1x32xf32>
      %12 = vector.broadcast %11 : vector<1x32xf32> to vector<8x32xf32>
      %13 = arith.subf %7, %12 : vector<8x32xf32>
      %14 = arith.mulf %13, %13 : vector<8x32xf32>
      %cst_10 = arith.constant dense<0.000000e+00> : vector<32xf32>
      %15 = vector.multi_reduction <add>, %14, %cst_10 [0] : vector<8x32xf32> to vector<32xf32>
      %16 = vector.shape_cast %15 : vector<32xf32> to vector<1x32xf32>
      %cst_11 = arith.constant 1.250000e-01 : f32
      %17 = vector.broadcast %cst_11 : f32 to vector<1x32xf32>
      %18 = arith.mulf %16, %17 : vector<1x32xf32>
      %cst_12 = arith.constant 9.99999974E-6 : f32
      %19 = vector.broadcast %cst_12 : f32 to vector<1x32xf32>
      %20 = arith.addf %18, %19 : vector<1x32xf32>
      %21 = math.rsqrt %20 : vector<1x32xf32>
      %c0_13 = arith.constant 0 : index
      %c0_14 = arith.constant 0 : index
      %22 = vector.load %arg2[%c0_13, %c0_14] : memref<1x32xf32, #tpu.memory_space<vmem>>, vector<1x32xf32>
      %23 = arith.mulf %21, %22 : vector<1x32xf32>
      %24 = vector.broadcast %23 : vector<1x32xf32> to vector<8x32xf32>
      %25 = arith.mulf %13, %24 : vector<8x32xf32>
      %c0_15 = arith.constant 0 : index
      %c0_16 = arith.constant 0 : index
      %26 = vector.load %arg3[%c0_15, %c0_16] : memref<1x32xf32, #tpu.memory_space<vmem>>, vector<1x32xf32>
      %27 = vector.broadcast %26 : vector<1x32xf32> to vector<8x32xf32>
      %28 = arith.addf %25, %27 : vector<8x32xf32>
      %c0_17 = arith.constant 0 : index
      %c0_18 = arith.constant 0 : index
      %29 = vector.load %arg6[%c0_17, %c0_18] : memref<8x32xf32, #tpu.memory_space<vmem>>, vector<8x32xf32>
      tpu.vector_store %arg6[%c0_17, %c0_18], %28 {strides = array<i32>} : memref<8x32xf32, #tpu.memory_space<vmem>>, vector<8x32xf32>,
      %30 = arith.truncf %28 : vector<8x32xf32> to vector<8x32xbf16>
      %c0_19 = arith.constant 0 : index
      %c0_20 = arith.constant 0 : index
      %31 = vector.load %arg7[%c0_19, %c0_20] : memref<8x32xbf16, #tpu.memory_space<vmem>>, vector<8x32xbf16>
      tpu.vector_store %arg7[%c0_19, %c0_20], %30 {strides = array<i32>} : memref<8x32xbf16, #tpu.memory_space<vmem>>, vector<8x32xbf16>,
    } else {
    }
    %c0 = arith.constant 0 : index
    %c0_1 = arith.constant 0 : index
    %3 = vector.load %arg7[%c0, %c0_1] : memref<8x32xbf16, #tpu.memory_space<vmem>>, vector<8x32xbf16>
    %c0_2 = arith.constant 0 : index
    %c0_3 = arith.constant 0 : index
    %4 = vector.load %arg4[%c0_2, %c0_3] : memref<32x256xbf16, #tpu.memory_space<vmem>>, vector<32x256xbf16>
    %cst = arith.constant dense<0.000000e+00> : vector<8x256xf32>
    %5 = tpu.matmul %3, %4, %cst {dimension_numbers = #tpu.dot_dimension_numbers<[1], [0], [0], [1], [0, 0, 1, 1], [], []>} : vector<8x32xbf16>, vector<32x256xbf16>, vector<8x256xf32> -> vector<8x256xf32>
    %c0_4 = arith.constant 0 : index
    %c0_5 = arith.constant 0 : index
    %6 = vector.load %arg5[%c0_4, %c0_5] : memref<8x256xf32, #tpu.memory_space<vmem>>, vector<8x256xf32>
    tpu.vector_store %arg5[%c0_4, %c0_5], %5 {strides = array<i32>} : memref<8x256xf32, #tpu.memory_space<vmem>>, vector<8x256xf32>,
    return
  }
  func.func @transform_0(%arg0: i32) -> (i32, i32) {
    %c0_i32 = arith.constant 0 : i32
    %c0_i32_0 = arith.constant 0 : i32
    %c0_i32_1 = arith.constant 0 : i32
    return %c0_i32, %c0_i32_0 : i32, i32
  }
  func.func @transform_1(%arg0: i32) -> (i32, i32) {
    %c0_i32 = arith.constant 0 : i32
    %c0_i32_0 = arith.constant 0 : i32
    %c0_i32_1 = arith.constant 0 : i32
    return %c0_i32, %c0_i32_0 : i32, i32
  }
  func.func @transform_2(%arg0: i32) -> (i32, i32) {
    %c0_i32 = arith.constant 0 : i32
    %c0_i32_0 = arith.constant 0 : i32
    %c0_i32_1 = arith.constant 0 : i32
    return %c0_i32, %c0_i32_0 : i32, i32
  }
  func.func @transform_3(%arg0: i32) -> (i32, i32) {
    %c0_i32 = arith.constant 0 : i32
    %c0_i32_0 = arith.constant 0 : i32
    return %c0_i32, %arg0 : i32, i32
  }
  func.func @transform_4(%arg0: i32) -> (i32, i32) {
    %c0_i32 = arith.constant 0 : i32
    %c0_i32_0 = arith.constant 0 : i32
    return %c0_i32, %arg0 : i32, i32
  }
  func.func @transform_5(%arg0: i32) -> (i32, i32) {
    %c0_i32 = arith.constant 0 : i32
    %c0_i32_0 = arith.constant 0 : i32
    %c0_i32_1 = arith.constant 0 : i32
    return %c0_i32, %c0_i32_0 : i32, i32
  }
}

</mosaic_0001>

<llo_original>
// kernel: tpu_custom_call.1
$region0: #{tpu_custom_call.1}
  #allocation0 [shape = 'u32[]', space=smem, size = 0x4, offset = 0x4, fixed_abs, tag = 'smem constant byte address 0x4 - core index']
  #allocation1 [shape = 'u32[144,128]{1,0:T(1,128)}', space=vmem, size = 0x12000, scoped, tag = 'internal scratch']
  #allocation2 [shape = 'bf16[8,32]{1,0:T(8,128)(2,1)}', space=vmem, size = 0x800, scoped, tag = 'scratch operand']
  %s0 = inlined_call_operand.hbm [shape: f32[8,32], index: 0, kind: input, shape index: {}]
  %s1 = inlined_call_operand.vmem [shape: f32[1,32], index: 1, kind: input, shape index: {}]
  %s2 = inlined_call_operand.vmem [shape: f32[1,32], index: 2, kind: input, shape index: {}]
  %s3 = inlined_call_operand.hbm [shape: bf16[32,256], index: 3, kind: input, shape index: {}]
  %s4 = inlined_call_operand.hbm [shape: f32[8,256], index: 4, kind: output, shape index: {0}]
  %s5 = inlined_call_operand.hbm [shape: f32[8,32], index: 5, kind: output, shape index: {1}]
  %6 = xla_tuple %s4, %s5
  %s7 = sld [smem:[#allocation0]]
  $region46: #{tpu_custom_call.1} parent=0
    _
  %s9 = ssub.s32 1, %s7
  %s10 = scalar_select 0, %s9, %s7
  $region1: #{tpu_custom_call.1} parent=0
    #allocation3 [shape = 'u8[4096]{0}', space=vmem, size = 0x1000, scoped, tag = 'input window, operand 0, single buffered']
    #allocation4 [shape = 's32[1]{0}', space=sflag, size = 0x4, scoped, tag = 'scoped memory for tpu_custom_call.1']
    #allocation5 [shape = 's32[1]{0}', space=sflag, size = 0x4, scoped, tag = 'scoped memory for tpu_custom_call.1']
    #allocation6 [shape = 'u8[16384]{0}', space=vmem, size = 0x4000, scoped, tag = 'input window, operand 3, single buffered']
    #allocation7 [shape = 's32[1]{0}', space=sflag, size = 0x4, scoped, tag = 'scoped memory for tpu_custom_call.1']
    #allocation8 [shape = 'u8[8192]{0}', space=vmem, size = 0x2000, scoped, tag = 'output window, operand 0, single buffered']
    #allocation9 [shape = 'u8[4096]{0}', space=vmem, size = 0x1000, scoped, tag = 'output window, operand 1, single buffered']
    #allocation10 [shape = 's32[1]{0}', space=sflag, size = 0x4, scoped, tag = 'scoped memory for tpu_custom_call.1']
    %11 = vsyncpa [#allocation4], 0
    %12 = vsyncpa [#allocation7], 0
    %13 = vsyncpa [#allocation5], 0
    %14 = vsyncpa [#allocation10], 0
    // Predicated region
    $region2: #{tpu_custom_call.1} parent=1 // pred_check
      _
    $region3: #{tpu_custom_call.1} parent=1 // pred_check_branch
      %16 = sbr.rel (0) target = $region5
    $region4: #{tpu_custom_call.1} parent=1 // pred_region
      %s18 = ssub.s32 128, 128
      %19 = vsyncadd [#allocation4], %s18
      %s21 = sshll.u32 [#allocation3], 4
      %s22 = int_to_ptr.vmem [resolvable:$true] %s21
      %24 = dma.hbm_to_vmem [thread:$0]  %s0, 128, %s22, [#allocation4]
    $region5: #{tpu_custom_call.1} parent=1 // pred_fallthru
      _
    // Predicated region
    $region6: #{tpu_custom_call.1} parent=1 // pred_check
      _
    $region7: #{tpu_custom_call.1} parent=1 // pred_check_branch
      %26 = sbr.rel (0) target = $region9
    $region8: #{tpu_custom_call.1} parent=1 // pred_region
      _
    $region9: #{tpu_custom_call.1} parent=1 // pred_fallthru
      _
    // Predicated region
    $region10: #{tpu_custom_call.1} parent=1 // pred_check
      _
    $region11: #{tpu_custom_call.1} parent=1 // pred_check_branch
      %28 = sbr.rel (0) target = $region13
    $region12: #{tpu_custom_call.1} parent=1 // pred_region
      _
    $region13: #{tpu_custom_call.1} parent=1 // pred_fallthru
      _
    // Predicated region
    $region14: #{tpu_custom_call.1} parent=1 // pred_check
      _
    $region15: #{tpu_custom_call.1} parent=1 // pred_check_branch
      %30 = sbr.rel (0) target = $region17
    $region16: #{tpu_custom_call.1} parent=1 // pred_region
      %s32 = ssub.s32 512, 512
      %33 = vsyncadd [#allocation7], %s32
      %s34 = sshll.u32 [#allocation6], 4
      %s35 = int_to_ptr.vmem [resolvable:$true] %s34
      %40 = dma.hbm_to_vmem [thread:$0]  %s3, 512, %s35, [#allocation7], 128, 128, 8
    $region17: #{tpu_custom_call.1} parent=1 // pred_fallthru
      _
    // Predicated region
    $region18: #{tpu_custom_call.1} parent=1 // pred_check
      _
    $region19: #{tpu_custom_call.1} parent=1 // pred_check_branch
      %42 = sbr.rel (0) target = $region21
    $region20: #{tpu_custom_call.1} parent=1 // pred_region
      %43 = dma.done [#allocation4], 128
    $region21: #{tpu_custom_call.1} parent=1 // pred_fallthru
      _
    // Predicated region
    $region22: #{tpu_custom_call.1} parent=1 // pred_check
      _
    $region23: #{tpu_custom_call.1} parent=1 // pred_check_branch
      %45 = sbr.rel (0) target = $region25
    $region24: #{tpu_custom_call.1} parent=1 // pred_region
      %46 = dma.done [#allocation7], 512
    $region25: #{tpu_custom_call.1} parent=1 // pred_fallthru
      _
    %p48 = scmp.eq.s32.totalorder 0, 0
    // Predicated region
    $region26: #{tpu_custom_call.1} parent=1 // pred_check
      %p49 = pneg %p48
    $region27: #{tpu_custom_call.1} parent=1 // pred_check_branch
      %51 = sbr.rel (%p49) target = $region29
    $region28: #{tpu_custom_call.1} parent=1 // pred_region
      %v52 = vld [vmem:[#allocation3] sm:$0xff]
      %vm53 = vcmask 261120
      %v54 = vsel %vm53, %v52, 0.0
      %v55 = vrot.slane %v54, 4
      %v56 = vadd.f32 %v54, %v55
      %v57 = vrot.slane %v56, 2
      %v58 = vadd.f32 %v56, %v57
      %v59 = vrot.slane %v58, 1
      %v60 = vadd.f32 %v58, %v59
      %v61 = vmul.f32 %v60, 0.125
      %v62 = vsub.f32 %v52, %v61
      %v63 = vmul.f32 %v62, %v62
      %v64 = vsel %vm53, %v63, 0.0
      %v65 = vrot.slane %v64, 4
      %v66 = vadd.f32 %v64, %v65
      %v67 = vrot.slane %v66, 2
      %v68 = vadd.f32 %v66, %v67
      %v69 = vrot.slane %v68, 1
      %v70 = vadd.f32 %v68, %v69
      %v71 = vmul.f32 %v70, 0.125
      %v72 = vadd.f32 %v71, 1e-05
      %v73 = vrsqrt.pop %v72
      %v74 = vld [vmem:[%s1] sm:$0x1]
      %v75 = vmul.f32 %v73, %v74
      %v76 = vlaneseq
      %v77 = vshrl.u32 %v76, 7
      %v78 = vsub.s32 0, %v77
      %v79 = vrot.slane %v75, %v78
      %v80 = vmul.f32 %v62, %v79
      %v81 = vld [vmem:[%s2] sm:$0x1]
      %v83 = vlaneseq
      %v84 = vshrl.u32 %v83, 7
      %v85 = vsub.s32 0, %v84
      %v86 = vrot.slane %v81, %v85
      %v88 = vadd.f32 %v80, %v86
      %89 = vst.msk [vmem:[#allocation9] sm:$0xff] %vm53, %v88
      %v90 = vpack.c.bf16 %v88, %v88
      %vm91 = vcmask 257024
      %92 = vst.msk [vmem:[#allocation2] sm:$0xf] %vm91, %v90
    $region29: #{tpu_custom_call.1} parent=1 // pred_fallthru
      _
    %v93 = vld [vmem:[#allocation2] sm:$0xf]
    %v94 = vld [vmem:[#allocation6] sm:$0xff]
    %v95 = vld [vmem:[#allocation6 + $0x8] sm:$0xff]
    %v96 = vld [vmem:[#allocation6 + $0x10] sm:$0xff]
    %v97 = vld [vmem:[#allocation6 + $0x18] sm:$0xff]
    %v102 = vunpack.c.l.b16 %v94
    %v103 = vunpack.c.h.b16 %v94
    %v104 = vunpack.c.l.b16 %v95
    %v105 = vunpack.c.h.b16 %v95
    %v106 = vunpack.c.l.b16 %v96
    %v107 = vunpack.c.h.b16 %v96
    %v108 = vunpack.c.l.b16 %v97
    %v109 = vunpack.c.h.b16 %v97
    %v110 = vpack.c.b16 %v104, %v102
    %v111 = vpack.c.b16 %v105, %v103
    %v112 = vpack.c.b16 %v108, %v106
    %v113 = vpack.c.b16 %v109, %v107
    %vm118 = vcmask 261120
    %v120 = vsel %vm118, %v93, 0
    %122 = vmatprep.subr.bf16.mxu0 0
    %123 = vmatpush1.bf16.msra.mxu0 0
    %124 = vmatprep.subr.bf16.mxu0 0
    %125 = vmatpush1.bf16.msra.mxu0 0
    %126 = vmatprep.subr.bf16.mxu0 0
    %127 = vmatpush1.bf16.msra.mxu0 0
    %128 = vmatprep.subr.bf16.mxu0 0
    %129 = vmatpush1.bf16.msra.mxu0 0
    %130 = vmatprep.subr.bf16.mxu0 0
    %131 = vmatpush1.bf16.msra.mxu0 0
    %132 = vmatprep.subr.bf16.mxu0 0
    %133 = vmatpush1.bf16.msra.mxu0 0
    %134 = vmatprep.subr.bf16.mxu0 %v113
    %135 = vmatpush1.bf16.msra.mxu0 %v112
    %136 = vmatprep.subr.bf16.mxu0 %v111
    %137 = vmatpush1.bf16.msra.mxu0 %v110
    %138 = vmatprep.subr.bf16.mxu0 0
    %139 = vmatpush2.bf16.msra.mxu0 0
    %140 = vmatprep.subr.bf16.mxu0 0
    %141 = vmatpush2.bf16.msra.mxu0 0
    %142 = vmatprep.subr.bf16.mxu0 0
    %143 = vmatpush2.bf16.msra.mxu0 0
    %144 = vmatprep.subr.bf16.mxu0 0
    %145 = vmatpush2.bf16.msra.mxu0 0
    %146 = vmatprep.subr.bf16.mxu0 0
    %147 = vmatpush2.bf16.msra.mxu0 0
    %148 = vmatprep.subr.bf16.mxu0 0
    %149 = vmatpush2.bf16.msra.mxu0 0
    %150 = vmatprep.subr.bf16.mxu0 0
    %151 = vmatpush2.bf16.msra.mxu0 0
    %152 = vmatprep.subr.bf16.mxu0 0
    %153 = vmatpush2.bf16.msra.mxu0 0
    %154 = vmatprep.mubr.bf16.mxu0 0
    %155 = vmatmul.mubr.bf16.gmra.mxu0 %v120
    %v156 = vpop.f32.mrf.mxu0
    %v157 = vadd.f32 0.0, %v156
    %v158 = vpop.f32.mrf.mxu0
    %v159 = vadd.f32 0.0, %v158
    %v160 = vpop.f32.mrf.mxu0
    %v161 = vpop.f32.mrf.mxu0
    %162 = vdwg.mxu0
    %163 = vst [vmem:[#allocation8] sm:$0xff] %v157
    %164 = vst [vmem:[#allocation8 + $0x8] sm:$0xff] %v159
    // Predicated region
    $region30: #{tpu_custom_call.1} parent=1 // pred_check
      _
    $region31: #{tpu_custom_call.1} parent=1 // pred_check_branch
      %166 = sbr.rel (0) target = $region33
    $region32: #{tpu_custom_call.1} parent=1 // pred_region
      %s168 = ssub.s32 256, 256
      %169 = vsyncadd [#allocation5], %s168
      %s171 = sshll.u32 [#allocation8], 4
      %s172 = int_to_ptr.vmem [resolvable:$true] %s171
      %174 = dma.vmem_to_hbm [thread:$0]  %s172, 256, %s4, [#allocation5]
    $region33: #{tpu_custom_call.1} parent=1 // pred_fallthru
      _
    // Predicated region
    $region34: #{tpu_custom_call.1} parent=1 // pred_check
      _
    $region35: #{tpu_custom_call.1} parent=1 // pred_check_branch
      %176 = sbr.rel (0) target = $region37
    $region36: #{tpu_custom_call.1} parent=1 // pred_region
      %s178 = ssub.s32 128, 128
      %179 = vsyncadd [#allocation10], %s178
      %s181 = sshll.u32 [#allocation9], 4
      %s182 = int_to_ptr.vmem [resolvable:$true] %s181
      %184 = dma.vmem_to_hbm [thread:$0]  %s182, 128, %s5, [#allocation10]
    $region37: #{tpu_custom_call.1} parent=1 // pred_fallthru
      _
    // Predicated region
    $region38: #{tpu_custom_call.1} parent=1 // pred_check
      _
    $region39: #{tpu_custom_call.1} parent=1 // pred_check_branch
      %186 = sbr.rel (0) target = $region41
    $region40: #{tpu_custom_call.1} parent=1 // pred_region
      %187 = dma.done [#allocation5], 256
    $region41: #{tpu_custom_call.1} parent=1 // pred_fallthru
      _
    // Predicated region
    $region42: #{tpu_custom_call.1} parent=1 // pred_check
      _
    $region43: #{tpu_custom_call.1} parent=1 // pred_check_branch
      %189 = sbr.rel (0) target = $region45
    $region44: #{tpu_custom_call.1} parent=1 // pred_region
      %190 = dma.done [#allocation10], 128
    $region45: #{tpu_custom_call.1} parent=1 // pred_fallthru
      _
    %191 = vsyncpa [#allocation4], 1
    %192 = vsyncpa [#allocation7], 1
    %193 = vsyncpa [#allocation5], 1
    %194 = vsyncpa [#allocation10], 1

</llo_original>
